<compile_context>
chip_gen: v5e
topology: v5e:2x2
jax: 0.10.0
libtpu: 0.0.40
codegen_flags: <defaults>
</compile_context>

<pallas_src>
import math
import functools

import jax
import jax.numpy as jnp
from jax import lax
from jax.experimental import pallas as pl
from jax.experimental.pallas import tpu as pltpu


def _fld_attention_kernel(q_ref, k_ref, v_ref, bias_ref,
                          wq_ref, bq_ref, wk_ref, bk_ref, wv_ref, bv_ref,
                          wo_ref, bo_ref, out_ref, ctx_ref,
                          *, num_heads, head_dim, batch_block):
    bb = batch_block
    P = q_ref.shape[1]
    S = k_ref.shape[1]
    E = q_ref.shape[2]
    Lp = out_ref.shape[2]
    scale = 1.0 / math.sqrt(head_dim)

    # ---- hoisted input projections: one E-wide MXU matmul per tensor ----
    q2 = q_ref[...].reshape(bb * P, E)                 # bf16
    k2 = k_ref[...].reshape(bb * S, E)
    v2 = v_ref[...].reshape(bb * S, E)

    # 1/sqrt(head_dim) folded into the Q projection epilogue (f32, pre-cast).
    qp = ((jnp.dot(q2, wq_ref[...], preferred_element_type=jnp.float32)
           + bq_ref[...]) * scale).astype(jnp.bfloat16).reshape(bb, P, E)
    kp = (jnp.dot(k2, wk_ref[...], preferred_element_type=jnp.float32)
          + bk_ref[...]).astype(jnp.bfloat16).reshape(bb, S, E)
    vp = (jnp.dot(v2, wv_ref[...], preferred_element_type=jnp.float32)
          + bv_ref[...]).astype(jnp.bfloat16).reshape(bb, S, E)

    # Mask bias broadcast hoisted out of the head loop (not CSE'd by JAX).
    bias = jnp.broadcast_to(bias_ref[...], (bb, P, S))  # f32: 0 / -1e30

    for h in range(num_heads):                         # static unroll (H small)
        lo = h * head_dim
        hi = lo + head_dim
        qh = qp[:, :, lo:hi]                           # (bb, P, hd) bf16
        kh = kp[:, :, lo:hi]                           # (bb, S, hd)
        vh = vp[:, :, lo:hi]                           # (bb, S, hd)
        # batched q.k^T: contract last dims, batch over bb (no explicit kh.T)
        s = lax.dot_general(qh, kh, (((2,), (2,)), ((0,), (0,))),
                            preferred_element_type=jnp.float32)   # (bb, P, S)
        s = s + bias
        m = jnp.max(s, axis=-1, keepdims=True)
        p = jnp.exp(s - m)
        denom = jnp.sum(p, axis=-1, keepdims=True)
        a = p * pl.reciprocal(denom, approx=True)      # EUP, frees VALU slots
        ctx = lax.dot_general(a.astype(jnp.bfloat16), vh,
                              (((2,), (1,)), ((0,), (0,))),
                              preferred_element_type=jnp.float32)  # (bb, P, hd)
        ctx_ref[:, :, lo:hi] = ctx                     # static lane offsets

    # single shared output projection; Lp is a multiple of 128 (lane-dense vst)
    C = ctx_ref[...].astype(jnp.bfloat16).reshape(bb * P, E)
    out = (jnp.dot(C, wo_ref[...], preferred_element_type=jnp.float32)
           + bo_ref[...])                              # (bb*P, Lp)
    out_ref[...] = out.reshape(bb, P, Lp).astype(out_ref.dtype)


def _tensorcores_per_chip():
    """Best-effort TensorCore-per-chip detection; default 1 (v5e/v6e-like)."""
    try:
        info = pltpu.get_tpu_info()
        for attr in ("num_cores", "num_tensorcores", "core_count",
                     "tensor_cores_per_chip", "cores_per_chip"):
            v = getattr(info, attr, None)
            if isinstance(v, int) and v > 0:
                return v
    except Exception:
        pass
    return 1


def _vmem_limit_bytes(bb, P, S, E, Lp):
    bf, f32 = 2, 4
    weights = (3 * E * E + E * Lp) * bf + (3 * E + Lp) * f32   # resident
    blocks = 2 * (bb * P * E * bf + 2 * bb * S * E * bf        # Q,K,V (x2 buf)
                  + bb * S * f32 + bb * P * Lp * f32)          # bias, out
    scratch = bb * P * E * f32                                 # ctx scratch
    total = weights + blocks + scratch
    # 2x headroom for in-kernel intermediates; clamp to [4 MiB, 64 MiB].
    return int(min(max(2 * total + (1 << 20), 4 << 20), 64 << 20))


def fld_attention(Q, K, V, mask, params, *, num_heads, batch_block=None):
    """Q: (B,P,E), K/V: (B,S,E), mask: (B,S) bool -> (B,P,latent_dim) f32."""
    B, P, E = Q.shape
    _, S, _ = K.shape
    assert E % num_heads == 0
    head_dim = E // num_heads

    wq, bq, wk, bk, wv, bv, wo, bo = params
    L = wo.shape[1]
    Lp = ((L + 127) // 128) * 128          # lane-dense padded output width

    if batch_block is None:
        # v5e/v6e (1 TC): grid=1, fold the whole batch (per-step overhead
        # dominates at these shapes).  v7x (2 TCs): keep >=2 parallel steps.
        n_tc = _tensorcores_per_chip()
        if n_tc >= 2 and B % 2 == 0 and B >= 2:
            batch_block = B // 2
        else:
            batch_block = B
    bb = batch_block
    assert B % bb == 0
    grid_b = B // bb

    # bf16 MXU operands (accumulation stays f32 inside the kernel).
    q_bf = Q.astype(jnp.bfloat16)
    k_bf = K.astype(jnp.bfloat16)
    v_bf = V.astype(jnp.bfloat16)
    wq_bf = wq.astype(jnp.bfloat16)
    wk_bf = wk.astype(jnp.bfloat16)
    wv_bf = wv.astype(jnp.bfloat16)
    wo_p = jnp.zeros((E, Lp), jnp.float32).at[:, :L].set(wo).astype(jnp.bfloat16)
    bo_p = jnp.zeros((1, Lp), jnp.float32).at[:, :L].set(bo.reshape(1, L))

    bq2 = bq.reshape(1, E).astype(jnp.float32)
    bk2 = bk.reshape(1, E).astype(jnp.float32)
    bv2 = bv.reshape(1, E).astype(jnp.float32)

    # additive mask bias (finite, so fully-masked rows can never produce NaN)
    bias = jnp.where(mask, 0.0, -1e30).astype(jnp.float32).reshape(B, 1, S)

    kernel = functools.partial(_fld_attention_kernel, num_heads=num_heads,
                               head_dim=head_dim, batch_block=bb)

    batch_spec = lambda shape: pl.BlockSpec(shape, lambda b: (b, 0, 0))
    # Weights are grid-invariant (constant index_map) -> single resident buffer.
    full_spec = lambda shape: pl.BlockSpec(shape, lambda b: (0,) * len(shape))

    out = pl.pallas_call(
        kernel,
        out_shape=jax.ShapeDtypeStruct((B, P, Lp), jnp.float32),
        grid=(grid_b,),
        in_specs=[
            batch_spec((bb, P, E)),      # Q  (bf16)
            batch_spec((bb, S, E)),      # K  (bf16)
            batch_spec((bb, S, E)),      # V  (bf16)
            batch_spec((bb, 1, S)),      # mask bias (f32)
            full_spec((E, E)),           # Wq (bf16)
            full_spec((1, E)),           # bq (f32)
            full_spec((E, E)),           # Wk
            full_spec((1, E)),           # bk
            full_spec((E, E)),           # Wv
            full_spec((1, E)),           # bv
            full_spec((E, Lp)),          # Wo (padded, bf16)
            full_spec((1, Lp)),          # bo (padded, f32)
        ],
        out_specs=batch_spec((bb, P, Lp)),
        scratch_shapes=[pltpu.VMEM((bb, P, E), jnp.float32)],   # per-head ctx
        compiler_params=pltpu.CompilerParams(
            dimension_semantics=("parallel",),
            vmem_limit_bytes=_vmem_limit_bytes(bb, P, S, E, Lp)),
    )(q_bf, k_bf, v_bf, bias, wq_bf, bq2, wk_bf, bk2, wv_bf, bv2, wo_p, bo_p)
    return out[..., :L]


def fld_attention_ref(Q, K, V, mask, params, *, num_heads):
    """Pure-JAX f32 reference mirroring the PyTorch forward (shared_out=True)."""
    wq, bq, wk, bk, wv, bv, wo, bo = params
    B, P, E = Q.shape
    _, S, _ = K.shape
    k = E // num_heads
    Qp = (Q @ wq + bq).reshape(B, P, num_heads, k).transpose(0, 2, 1, 3)
    Kp = (K @ wk + bk).reshape(B, S, num_heads, k).transpose(0, 2, 1, 3)
    Vp = (V @ wv + bv).reshape(B, S, num_heads, k).transpose(0, 2, 1, 3)
    scores = jnp.einsum('bhpk,bhsk->bhps', Qp, Kp) / math.sqrt(k)
    m = mask[:, None, None, :]
    scores = jnp.where(m, scores, -jnp.inf)
    A = jax.nn.softmax(scores, axis=-1)
    C = jnp.einsum('bhps,bhsk->bhpk', A, Vp)
    C = C.transpose(0, 2, 1, 3).reshape(B, P, E)
    return C @ wo + bo


if __name__ == "__main__":
    # Small shapes consistent with the module: B=2, P=8 queries, S=8 keys,
    # embed_dim=32, num_heads=2 (head_dim=16), latent_dim=16.
    B, P, S, E, H, L = 2, 8, 8, 32, 2, 16

    key = jax.random.PRNGKey(0)
    ks = jax.random.split(key, 12)

    Q = jax.random.normal(ks[0], (B, P, E), jnp.float32)
    K = jax.random.normal(ks[1], (B, S, E), jnp.float32)
    V = jax.random.normal(ks[2], (B, S, E), jnp.float32)
    # Boolean mask over key positions; at least one valid key per batch.
    mask = jax.random.bernoulli(ks[3], p=0.8, shape=(B, S))
    mask = mask.at[:, 0].set(True)

    # Deterministic parameter init (input-major weights: y = x @ W + b).
    def init_linear(kw, kb, fan_in, fan_out):
        bound = 1.0 / math.sqrt(fan_in)
        w = jax.random.uniform(kw, (fan_in, fan_out), jnp.float32, -bound, bound)
        b = jax.random.uniform(kb, (fan_out,), jnp.float32, -bound, bound)
        return w, b

    wq, bq = init_linear(ks[4], ks[5], E, E)
    wk, bk = init_linear(ks[6], ks[7], E, E)
    wv, bv = init_linear(ks[8], ks[9], E, E)
    wo, bo = init_linear(ks[10], ks[11], E, L)
    params = (wq, bq, wk, bk, wv, bv, wo, bo)

    out = fld_attention(Q, K, V, mask, params, num_heads=H)
    out = jax.block_until_ready(out)

    ref = fld_attention_ref(Q, K, V, mask, params, num_heads=H)
    assert out.shape == (B, P, L)
    # bf16 MXU operands + approx reciprocal -> compare with a loosened tolerance.
    assert jnp.allclose(out, ref, atol=5e-2, rtol=5e-2), "mismatch vs JAX reference"

    print("KERNEL_OK")
</pallas_src>

<mosaic_0001>
module attributes {stable_mosaic.version = 11 : i64} {
  func.func @_fld_attention_kernel(%arg0: i32, %arg1: memref<2x8x32xbf16, #tpu.memory_space<vmem>>, %arg2: memref<2x8x32xbf16, #tpu.memory_space<vmem>>, %arg3: memref<2x8x32xbf16, #tpu.memory_space<vmem>>, %arg4: memref<2x1x8xf32, #tpu.memory_space<vmem>>, %arg5: memref<32x32xbf16, #tpu.memory_space<vmem>>, %arg6: memref<1x32xf32, #tpu.memory_space<vmem>>, %arg7: memref<32x32xbf16, #tpu.memory_space<vmem>>, %arg8: memref<1x32xf32, #tpu.memory_space<vmem>>, %arg9: memref<32x32xbf16, #tpu.memory_space<vmem>>, %arg10: memref<1x32xf32, #tpu.memory_space<vmem>>, %arg11: memref<32x128xbf16, #tpu.memory_space<vmem>>, %arg12: memref<1x128xf32, #tpu.memory_space<vmem>>, %arg13: memref<2x8x128xf32, #tpu.memory_space<vmem>>, %arg14: memref<2x8x32xf32, #tpu.memory_space<vmem>>) attributes {dimension_semantics = [#tpu.dimension_semantics<parallel>], iteration_bounds = array<i64: 1>, scalar_prefetch = 0 : i64, scratch_operands = 1 : i64, tpu.core_type = #tpu.core_type<tc>, window_params = [{transform_indices = @transform_0, window_bounds = array<i64: 2, 8, 32>}, {transform_indices = @transform_1, window_bounds = array<i64: 2, 8, 32>}, {transform_indices = @transform_2, window_bounds = array<i64: 2, 8, 32>}, {transform_indices = @transform_3, window_bounds = array<i64: 2, 1, 8>}, {pipeline_mode = #tpu.pipeline_mode<synchronous>, transform_indices = @transform_4, window_bounds = array<i64: 32, 32>}, {pipeline_mode = #tpu.pipeline_mode<synchronous>, transform_indices = @transform_5, window_bounds = array<i64: 1, 32>}, {pipeline_mode = #tpu.pipeline_mode<synchronous>, transform_indices = @transform_6, window_bounds = array<i64: 32, 32>}, {pipeline_mode = #tpu.pipeline_mode<synchronous>, transform_indices = @transform_7, window_bounds = array<i64: 1, 32>}, {pipeline_mode = #tpu.pipeline_mode<synchronous>, transform_indices = @transform_8, window_bounds = array<i64: 32, 32>}, {pipeline_mode = #tpu.pipeline_mode<synchronous>, transform_indices = @transform_9, window_bounds = array<i64: 1, 32>}, {pipeline_mode = #tpu.pipeline_mode<synchronous>, transform_indices = @transform_10, window_bounds = array<i64: 32, 128>}, {pipeline_mode = #tpu.pipeline_mode<synchronous>, transform_indices = @transform_11, window_bounds = array<i64: 1, 128>}, {transform_indices = @transform_12, window_bounds = array<i64: 2, 8, 128>}]} {
    %c0 = arith.constant 0 : index
    %c0_0 = arith.constant 0 : index
    %c0_1 = arith.constant 0 : index
    %0 = vector.load %arg1[%c0, %c0_0, %c0_1] : memref<2x8x32xbf16, #tpu.memory_space<vmem>>, vector<2x8x32xbf16>
    %1 = vector.shape_cast %0 : vector<2x8x32xbf16> to vector<16x32xbf16>
    %c0_2 = arith.constant 0 : index
    %c0_3 = arith.constant 0 : index
    %c0_4 = arith.constant 0 : index
    %2 = vector.load %arg2[%c0_2, %c0_3, %c0_4] : memref<2x8x32xbf16, #tpu.memory_space<vmem>>, vector<2x8x32xbf16>
    %3 = vector.shape_cast %2 : vector<2x8x32xbf16> to vector<16x32xbf16>
    %c0_5 = arith.constant 0 : index
    %c0_6 = arith.constant 0 : index
    %c0_7 = arith.constant 0 : index
    %4 = vector.load %arg3[%c0_5, %c0_6, %c0_7] : memref<2x8x32xbf16, #tpu.memory_space<vmem>>, vector<2x8x32xbf16>
    %5 = vector.shape_cast %4 : vector<2x8x32xbf16> to vector<16x32xbf16>
    %c0_8 = arith.constant 0 : index
    %c0_9 = arith.constant 0 : index
    %6 = vector.load %arg5[%c0_8, %c0_9] : memref<32x32xbf16, #tpu.memory_space<vmem>>, vector<32x32xbf16>
    %cst = arith.constant dense<0.000000e+00> : vector<16x32xf32>
    %7 = tpu.matmul %1, %6, %cst {dimension_numbers = #tpu.dot_dimension_numbers<[1], [0], [0], [1], [0, 0, 1, 1], [], []>} : vector<16x32xbf16>, vector<32x32xbf16>, vector<16x32xf32> -> vector<16x32xf32>
    %c0_10 = arith.constant 0 : index
    %c0_11 = arith.constant 0 : index
    %8 = vector.load %arg6[%c0_10, %c0_11] : memref<1x32xf32, #tpu.memory_space<vmem>>, vector<1x32xf32>
    %9 = vector.broadcast %8 : vector<1x32xf32> to vector<16x32xf32>
    %10 = arith.addf %7, %9 : vector<16x32xf32>
    %cst_12 = arith.constant 2.500000e-01 : f32
    %11 = vector.broadcast %cst_12 : f32 to vector<16x32xf32>
    %12 = arith.mulf %10, %11 : vector<16x32xf32>
    %13 = arith.truncf %12 : vector<16x32xf32> to vector<16x32xbf16>
    %14 = vector.shape_cast %13 : vector<16x32xbf16> to vector<2x8x32xbf16>
    %c0_13 = arith.constant 0 : index
    %c0_14 = arith.constant 0 : index
    %15 = vector.load %arg7[%c0_13, %c0_14] : memref<32x32xbf16, #tpu.memory_space<vmem>>, vector<32x32xbf16>
    %cst_15 = arith.constant dense<0.000000e+00> : vector<16x32xf32>
    %16 = tpu.matmul %3, %15, %cst_15 {dimension_numbers = #tpu.dot_dimension_numbers<[1], [0], [0], [1], [0, 0, 1, 1], [], []>} : vector<16x32xbf16>, vector<32x32xbf16>, vector<16x32xf32> -> vector<16x32xf32>
    %c0_16 = arith.constant 0 : index
    %c0_17 = arith.constant 0 : index
    %17 = vector.load %arg8[%c0_16, %c0_17] : memref<1x32xf32, #tpu.memory_space<vmem>>, vector<1x32xf32>
    %18 = vector.broadcast %17 : vector<1x32xf32> to vector<16x32xf32>
    %19 = arith.addf %16, %18 : vector<16x32xf32>
    %20 = arith.truncf %19 : vector<16x32xf32> to vector<16x32xbf16>
    %21 = vector.shape_cast %20 : vector<16x32xbf16> to vector<2x8x32xbf16>
    %c0_18 = arith.constant 0 : index
    %c0_19 = arith.constant 0 : index
    %22 = vector.load %arg9[%c0_18, %c0_19] : memref<32x32xbf16, #tpu.memory_space<vmem>>, vector<32x32xbf16>
    %cst_20 = arith.constant dense<0.000000e+00> : vector<16x32xf32>
    %23 = tpu.matmul %5, %22, %cst_20 {dimension_numbers = #tpu.dot_dimension_numbers<[1], [0], [0], [1], [0, 0, 1, 1], [], []>} : vector<16x32xbf16>, vector<32x32xbf16>, vector<16x32xf32> -> vector<16x32xf32>
    %c0_21 = arith.constant 0 : index
    %c0_22 = arith.constant 0 : index
    %24 = vector.load %arg10[%c0_21, %c0_22] : memref<1x32xf32, #tpu.memory_space<vmem>>, vector<1x32xf32>
    %25 = vector.broadcast %24 : vector<1x32xf32> to vector<16x32xf32>
    %26 = arith.addf %23, %25 : vector<16x32xf32>
    %27 = arith.truncf %26 : vector<16x32xf32> to vector<16x32xbf16>
    %28 = vector.shape_cast %27 : vector<16x32xbf16> to vector<2x8x32xbf16>
    %c0_23 = arith.constant 0 : index
    %c0_24 = arith.constant 0 : index
    %c0_25 = arith.constant 0 : index
    %29 = vector.load %arg4[%c0_23, %c0_24, %c0_25] : memref<2x1x8xf32, #tpu.memory_space<vmem>>, vector<2x1x8xf32>
    %30 = vector.shape_cast %29 : vector<2x1x8xf32> to vector<2x1x8xf32>
    %31 = vector.broadcast %30 : vector<2x1x8xf32> to vector<2x8x8xf32>
    %32 = vector.extract_strided_slice %14 {offsets = [0, 0, 0], sizes = [2, 8, 16], strides = [1, 1, 1]} : vector<2x8x32xbf16> to vector<2x8x16xbf16>
    %33 = vector.extract_strided_slice %21 {offsets = [0, 0, 0], sizes = [2, 8, 16], strides = [1, 1, 1]} : vector<2x8x32xbf16> to vector<2x8x16xbf16>
    %34 = vector.extract_strided_slice %28 {offsets = [0, 0, 0], sizes = [2, 8, 16], strides = [1, 1, 1]} : vector<2x8x32xbf16> to vector<2x8x16xbf16>
    %cst_26 = arith.constant dense<0.000000e+00> : vector<2x8x8xf32>
    %35 = tpu.matmul %32, %33, %cst_26 {dimension_numbers = #tpu.dot_dimension_numbers<[2], [2], [1], [1], [0, 0, 0, 1, 1, 1], [0], [0]>} : vector<2x8x16xbf16>, vector<2x8x16xbf16>, vector<2x8x8xf32> -> vector<2x8x8xf32>
    %36 = arith.addf %35, %31 : vector<2x8x8xf32>
    %cst_27 = arith.constant dense<0xFF800000> : vector<2x8xf32>
    %37 = vector.multi_reduction <maximumf>, %36, %cst_27 [2] : vector<2x8x8xf32> to vector<2x8xf32>
    %38 = vector.shape_cast %37 : vector<2x8xf32> to vector<2x8x1xf32>
    %39 = vector.broadcast %38 : vector<2x8x1xf32> to vector<2x8x8xf32>
    %40 = arith.subf %36, %39 : vector<2x8x8xf32>
    %41 = math.exp %40 : vector<2x8x8xf32>
    %cst_28 = arith.constant dense<0.000000e+00> : vector<2x8xf32>
    %42 = vector.multi_reduction <add>, %41, %cst_28 [2] : vector<2x8x8xf32> to vector<2x8xf32>
    %43 = vector.shape_cast %42 : vector<2x8xf32> to vector<2x8x1xf32>
    %44 = tpu.reciprocal %43 {approx = true} : vector<2x8x1xf32> -> vector<2x8x1xf32>
    %45 = vector.broadcast %44 : vector<2x8x1xf32> to vector<2x8x8xf32>
    %46 = arith.mulf %41, %45 : vector<2x8x8xf32>
    %47 = arith.truncf %46 : vector<2x8x8xf32> to vector<2x8x8xbf16>
    %cst_29 = arith.constant dense<0.000000e+00> : vector<2x8x16xf32>
    %48 = tpu.matmul %47, %34, %cst_29 {dimension_numbers = #tpu.dot_dimension_numbers<[2], [1], [1], [2], [0, 0, 0, 1, 1, 2], [0], [0]>} : vector<2x8x8xbf16>, vector<2x8x16xbf16>, vector<2x8x16xf32> -> vector<2x8x16xf32>
    %c0_30 = arith.constant 0 : index
    %c0_31 = arith.constant 0 : index
    %c0_32 = arith.constant 0 : index
    %49 = vector.load %arg14[%c0_30, %c0_31, %c0_32] : memref<2x8x32xf32, #tpu.memory_space<vmem>>, vector<2x8x16xf32>
    tpu.vector_store %arg14[%c0_30, %c0_31, %c0_32], %48 {strides = array<i32>} : memref<2x8x32xf32, #tpu.memory_space<vmem>>, vector<2x8x16xf32>,
    %50 = vector.extract_strided_slice %14 {offsets = [0, 0, 16], sizes = [2, 8, 16], strides = [1, 1, 1]} : vector<2x8x32xbf16> to vector<2x8x16xbf16>
    %51 = vector.extract_strided_slice %21 {offsets = [0, 0, 16], sizes = [2, 8, 16], strides = [1, 1, 1]} : vector<2x8x32xbf16> to vector<2x8x16xbf16>
    %52 = vector.extract_strided_slice %28 {offsets = [0, 0, 16], sizes = [2, 8, 16], strides = [1, 1, 1]} : vector<2x8x32xbf16> to vector<2x8x16xbf16>
    %cst_33 = arith.constant dense<0.000000e+00> : vector<2x8x8xf32>
    %53 = tpu.matmul %50, %51, %cst_33 {dimension_numbers = #tpu.dot_dimension_numbers<[2], [2], [1], [1], [0, 0, 0, 1, 1, 1], [0], [0]>} : vector<2x8x16xbf16>, vector<2x8x16xbf16>, vector<2x8x8xf32> -> vector<2x8x8xf32>
    %54 = arith.addf %53, %31 : vector<2x8x8xf32>
    %cst_34 = arith.constant dense<0xFF800000> : vector<2x8xf32>
    %55 = vector.multi_reduction <maximumf>, %54, %cst_34 [2] : vector<2x8x8xf32> to vector<2x8xf32>
    %56 = vector.shape_cast %55 : vector<2x8xf32> to vector<2x8x1xf32>
    %57 = vector.broadcast %56 : vector<2x8x1xf32> to vector<2x8x8xf32>
    %58 = arith.subf %54, %57 : vector<2x8x8xf32>
    %59 = math.exp %58 : vector<2x8x8xf32>
    %cst_35 = arith.constant dense<0.000000e+00> : vector<2x8xf32>
    %60 = vector.multi_reduction <add>, %59, %cst_35 [2] : vector<2x8x8xf32> to vector<2x8xf32>
    %61 = vector.shape_cast %60 : vector<2x8xf32> to vector<2x8x1xf32>
    %62 = tpu.reciprocal %61 {approx = true} : vector<2x8x1xf32> -> vector<2x8x1xf32>
    %63 = vector.broadcast %62 : vector<2x8x1xf32> to vector<2x8x8xf32>
    %64 = arith.mulf %59, %63 : vector<2x8x8xf32>
    %65 = arith.truncf %64 : vector<2x8x8xf32> to vector<2x8x8xbf16>
    %cst_36 = arith.constant dense<0.000000e+00> : vector<2x8x16xf32>
    %66 = tpu.matmul %65, %52, %cst_36 {dimension_numbers = #tpu.dot_dimension_numbers<[2], [1], [1], [2], [0, 0, 0, 1, 1, 2], [0], [0]>} : vector<2x8x8xbf16>, vector<2x8x16xbf16>, vector<2x8x16xf32> -> vector<2x8x16xf32>
    %c0_37 = arith.constant 0 : index
    %c0_38 = arith.constant 0 : index
    %c16 = arith.constant 16 : index
    %67 = vector.load %arg14[%c0_37, %c0_38, %c16] : memref<2x8x32xf32, #tpu.memory_space<vmem>>, vector<2x8x16xf32>
    tpu.vector_store %arg14[%c0_37, %c0_38, %c16], %66 {strides = array<i32>} : memref<2x8x32xf32, #tpu.memory_space<vmem>>, vector<2x8x16xf32>,
    %c0_39 = arith.constant 0 : index
    %c0_40 = arith.constant 0 : index
    %c0_41 = arith.constant 0 : index
    %68 = vector.load %arg14[%c0_39, %c0_40, %c0_41] : memref<2x8x32xf32, #tpu.memory_space<vmem>>, vector<2x8x32xf32>
    %69 = arith.truncf %68 : vector<2x8x32xf32> to vector<2x8x32xbf16>
    %70 = vector.shape_cast %69 : vector<2x8x32xbf16> to vector<16x32xbf16>
    %c0_42 = arith.constant 0 : index
    %c0_43 = arith.constant 0 : index
    %71 = vector.load %arg11[%c0_42, %c0_43] : memref<32x128xbf16, #tpu.memory_space<vmem>>, vector<32x128xbf16>
    %cst_44 = arith.constant dense<0.000000e+00> : vector<16x128xf32>
    %72 = tpu.matmul %70, %71, %cst_44 {dimension_numbers = #tpu.dot_dimension_numbers<[1], [0], [0], [1], [0, 0, 1, 1], [], []>} : vector<16x32xbf16>, vector<32x128xbf16>, vector<16x128xf32> -> vector<16x128xf32>
    %c0_45 = arith.constant 0 : index
    %c0_46 = arith.constant 0 : index
    %73 = vector.load %arg12[%c0_45, %c0_46] : memref<1x128xf32, #tpu.memory_space<vmem>>, vector<1x128xf32>
    %74 = vector.broadcast %73 : vector<1x128xf32> to vector<16x128xf32>
    %75 = arith.addf %72, %74 : vector<16x128xf32>
    %76 = vector.shape_cast %75 : vector<16x128xf32> to vector<2x8x128xf32>
    %c0_47 = arith.constant 0 : index
    %c0_48 = arith.constant 0 : index
    %c0_49 = arith.constant 0 : index
    %77 = vector.load %arg13[%c0_47, %c0_48, %c0_49] : memref<2x8x128xf32, #tpu.memory_space<vmem>>, vector<2x8x128xf32>
    tpu.vector_store %arg13[%c0_47, %c0_48, %c0_49], %76 {strides = array<i32>} : memref<2x8x128xf32, #tpu.memory_space<vmem>>, vector<2x8x128xf32>,
    return
  }
  func.func @transform_0(%arg0: i32) -> (i32, i32, i32) {
    %c0_i32 = arith.constant 0 : i32
    %c0_i32_0 = arith.constant 0 : i32
    %c0_i32_1 = arith.constant 0 : i32
    return %arg0, %c0_i32, %c0_i32_0 : i32, i32, i32
  }
  func.func @transform_1(%arg0: i32) -> (i32, i32, i32) {
    %c0_i32 = arith.constant 0 : i32
    %c0_i32_0 = arith.constant 0 : i32
    %c0_i32_1 = arith.constant 0 : i32
    return %arg0, %c0_i32, %c0_i32_0 : i32, i32, i32
  }
  func.func @transform_2(%arg0: i32) -> (i32, i32, i32) {
    %c0_i32 = arith.constant 0 : i32
    %c0_i32_0 = arith.constant 0 : i32
    %c0_i32_1 = arith.constant 0 : i32
    return %arg0, %c0_i32, %c0_i32_0 : i32, i32, i32
  }
  func.func @transform_3(%arg0: i32) -> (i32, i32, i32) {
    %c0_i32 = arith.constant 0 : i32
    %c0_i32_0 = arith.constant 0 : i32
    %c0_i32_1 = arith.constant 0 : i32
    return %arg0, %c0_i32, %c0_i32_0 : i32, i32, i32
  }
  func.func @transform_4(%arg0: i32) -> (i32, i32) {
    %c0_i32 = arith.constant 0 : i32
    %c0_i32_0 = arith.constant 0 : i32
    %c0_i32_1 = arith.constant 0 : i32
    return %c0_i32, %c0_i32_0 : i32, i32
  }
  func.func @transform_5(%arg0: i32) -> (i32, i32) {
    %c0_i32 = arith.constant 0 : i32
    %c0_i32_0 = arith.constant 0 : i32
    %c0_i32_1 = arith.constant 0 : i32
    return %c0_i32, %c0_i32_0 : i32, i32
  }
  func.func @transform_6(%arg0: i32) -> (i32, i32) {
    %c0_i32 = arith.constant 0 : i32
    %c0_i32_0 = arith.constant 0 : i32
    %c0_i32_1 = arith.constant 0 : i32
    return %c0_i32, %c0_i32_0 : i32, i32
  }
  func.func @transform_7(%arg0: i32) -> (i32, i32) {
    %c0_i32 = arith.constant 0 : i32
    %c0_i32_0 = arith.constant 0 : i32
    %c0_i32_1 = arith.constant 0 : i32
    return %c0_i32, %c0_i32_0 : i32, i32
  }
  func.func @transform_8(%arg0: i32) -> (i32, i32) {
    %c0_i32 = arith.constant 0 : i32
    %c0_i32_0 = arith.constant 0 : i32
    %c0_i32_1 = arith.constant 0 : i32
    return %c0_i32, %c0_i32_0 : i32, i32
  }
  func.func @transform_9(%arg0: i32) -> (i32, i32) {
    %c0_i32 = arith.constant 0 : i32
    %c0_i32_0 = arith.constant 0 : i32
    %c0_i32_1 = arith.constant 0 : i32
    return %c0_i32, %c0_i32_0 : i32, i32
  }
  func.func @transform_10(%arg0: i32) -> (i32, i32) {
    %c0_i32 = arith.constant 0 : i32
    %c0_i32_0 = arith.constant 0 : i32
    %c0_i32_1 = arith.constant 0 : i32
    return %c0_i32, %c0_i32_0 : i32, i32
  }
  func.func @transform_11(%arg0: i32) -> (i32, i32) {
    %c0_i32 = arith.constant 0 : i32
    %c0_i32_0 = arith.constant 0 : i32
    %c0_i32_1 = arith.constant 0 : i32
    return %c0_i32, %c0_i32_0 : i32, i32
  }
  func.func @transform_12(%arg0: i32) -> (i32, i32, i32) {
    %c0_i32 = arith.constant 0 : i32
    %c0_i32_0 = arith.constant 0 : i32
    %c0_i32_1 = arith.constant 0 : i32
    return %arg0, %c0_i32, %c0_i32_0 : i32, i32, i32
  }
}

</mosaic_0001>

<llo_original>
// kernel: tpu_custom_call.1
$region0: #{tpu_custom_call.1}
  #allocation0 [shape = 'u32[]', space=smem, size = 0x4, offset = 0x4, fixed_abs, tag = 'smem constant byte address 0x4 - core index']
  #allocation1 [shape = 'u32[72,128]{1,0:T(1,128)}', space=vmem, size = 0x9000, scoped, tag = 'internal scratch']
  #allocation2 [shape = 'f32[2,8,32]{2,1,0:T(8,128)}', space=vmem, size = 0x2000, scoped, tag = 'scratch operand']
  %s0 = inlined_call_operand.hbm [shape: bf16[2,8,32], index: 0, kind: input, shape index: {}]
  %s1 = inlined_call_operand.hbm [shape: bf16[2,8,32], index: 1, kind: input, shape index: {}]
  %s2 = inlined_call_operand.hbm [shape: bf16[2,8,32], index: 2, kind: input, shape index: {}]
  %s3 = inlined_call_operand.vmem [shape: f32[2,1,8], index: 3, kind: input, shape index: {}]
  %s4 = inlined_call_operand.hbm [shape: bf16[32,32], index: 4, kind: input, shape index: {}]
  %s5 = inlined_call_operand.vmem [shape: f32[1,32], index: 5, kind: input, shape index: {}]
  %s6 = inlined_call_operand.hbm [shape: bf16[32,32], index: 6, kind: input, shape index: {}]
  %s7 = inlined_call_operand.vmem [shape: f32[1,32], index: 7, kind: input, shape index: {}]
  %s8 = inlined_call_operand.hbm [shape: bf16[32,32], index: 8, kind: input, shape index: {}]
  %s9 = inlined_call_operand.vmem [shape: f32[1,32], index: 9, kind: input, shape index: {}]
  %s10 = inlined_call_operand.hbm [shape: bf16[32,128], index: 10, kind: input, shape index: {}]
  %s11 = inlined_call_operand.vmem [shape: f32[1,128], index: 11, kind: input, shape index: {}]
  %s12 = inlined_call_operand.hbm [shape: f32[2,8,128], index: 12, kind: output, shape index: {}]
  %s13 = sld [smem:[#allocation0]]
  $region86: #{tpu_custom_call.1} parent=0
    _
  %s15 = ssub.s32 1, %s13
  %s16 = scalar_select 0, %s15, %s13
  $region1: #{tpu_custom_call.1} parent=0
    #allocation3 [shape = 'u8[4096]{0}', space=vmem, size = 0x1000, scoped, tag = 'input window, operand 0, single buffered']
    #allocation4 [shape = 's32[1]{0}', space=sflag, size = 0x4, scoped, tag = 'scoped memory for tpu_custom_call.1']
    #allocation5 [shape = 's32[1]{0}', space=sflag, size = 0x4, scoped, tag = 'scoped memory for tpu_custom_call.1']
    #allocation6 [shape = 'u8[4096]{0}', space=vmem, size = 0x1000, scoped, tag = 'input window, operand 1, single buffered']
    #allocation7 [shape = 's32[1]{0}', space=sflag, size = 0x4, scoped, tag = 'scoped memory for tpu_custom_call.1']
    #allocation8 [shape = 'u8[4096]{0}', space=vmem, size = 0x1000, scoped, tag = 'input window, operand 2, single buffered']
    #allocation9 [shape = 'u8[8192]{0}', space=vmem, size = 0x2000, scoped, tag = 'input window, operand 4, single buffered']
    #allocation10 [shape = 's32[1]{0}', space=sflag, size = 0x4, scoped, tag = 'scoped memory for tpu_custom_call.1']
    #allocation11 [shape = 'u8[8192]{0}', space=vmem, size = 0x2000, scoped, tag = 'input window, operand 6, single buffered']
    #allocation12 [shape = 'u8[8192]{0}', space=vmem, size = 0x2000, scoped, tag = 'input window, operand 8, single buffered']
    #allocation13 [shape = 's32[1]{0}', space=sflag, size = 0x4, scoped, tag = 'scoped memory for tpu_custom_call.1']
    #allocation14 [shape = 'u8[8192]{0}', space=vmem, size = 0x2000, scoped, tag = 'input window, operand 10, single buffered']
    #allocation15 [shape = 'u8[8192]{0}', space=vmem, size = 0x2000, scoped, tag = 'output window, operand 0, single buffered']
    %17 = vsyncpa [#allocation4], 0
    %18 = vsyncpa [#allocation7], 0
    %19 = vsyncpa [#allocation10], 0
    %20 = vsyncpa [#allocation13], 0
    %21 = vsyncpa [#allocation5], 0
    // Predicated region
    $region2: #{tpu_custom_call.1} parent=1 // pred_check
      _
    $region3: #{tpu_custom_call.1} parent=1 // pred_check_branch
      %23 = sbr.rel (0) target = $region5
    $region4: #{tpu_custom_call.1} parent=1 // pred_region
      %25 = vsyncadd [#allocation4], 0
      %s26 = sshll.u32 %s0, 4
      %s27 = int_to_ptr.hbm [resolvable:$true] %s26
      %s28 = sshll.u32 [#allocation3], 4
      %s29 = int_to_ptr.vmem [resolvable:$true] %s28
      %34 = dma.hbm_to_vmem [thread:$0]  %s27, 128, %s29, [#allocation4], 64, 64, 4
    $region5: #{tpu_custom_call.1} parent=1 // pred_fallthru
      _
    // Predicated region
    $region6: #{tpu_custom_call.1} parent=1 // pred_check
      _
    $region7: #{tpu_custom_call.1} parent=1 // pred_check_branch
      %36 = sbr.rel (0) target = $region9
    $region8: #{tpu_custom_call.1} parent=1 // pred_region
      %38 = vsyncadd [#allocation7], 0
      %s39 = sshll.u32 %s1, 4
      %s40 = int_to_ptr.hbm [resolvable:$true] %s39
      %s41 = sshll.u32 [#allocation6], 4
      %s42 = int_to_ptr.vmem [resolvable:$true] %s41
      %47 = dma.hbm_to_vmem [thread:$0]  %s40, 128, %s42, [#allocation7], 64, 64, 4
    $region9: #{tpu_custom_call.1} parent=1 // pred_fallthru
      _
    // Predicated region
    $region10: #{tpu_custom_call.1} parent=1 // pred_check
      _
    $region11: #{tpu_custom_call.1} parent=1 // pred_check_branch
      %49 = sbr.rel (0) target = $region13
    $region12: #{tpu_custom_call.1} parent=1 // pred_region
      %51 = vsyncadd [#allocation7], 0
      %s52 = sshll.u32 %s2, 4
      %s53 = int_to_ptr.hbm [resolvable:$true] %s52
      %s54 = sshll.u32 [#allocation8], 4
      %s55 = int_to_ptr.vmem [resolvable:$true] %s54
      %60 = dma.hbm_to_vmem [thread:$0]  %s53, 128, %s55, [#allocation7], 64, 64, 4
    $region13: #{tpu_custom_call.1} parent=1 // pred_fallthru
      _
    // Predicated region
    $region14: #{tpu_custom_call.1} parent=1 // pred_check
      _
    $region15: #{tpu_custom_call.1} parent=1 // pred_check_branch
      %62 = sbr.rel (0) target = $region17
    $region16: #{tpu_custom_call.1} parent=1 // pred_region
      _
    $region17: #{tpu_custom_call.1} parent=1 // pred_fallthru
      _
    // Predicated region
    $region18: #{tpu_custom_call.1} parent=1 // pred_check
      _
    $region19: #{tpu_custom_call.1} parent=1 // pred_check_branch
      %64 = sbr.rel (0) target = $region21
    $region20: #{tpu_custom_call.1} parent=1 // pred_region
      %66 = vsyncadd [#allocation10], 0
      %s67 = sshll.u32 %s4, 4
      %s68 = int_to_ptr.hbm [resolvable:$true] %s67
      %s69 = sshll.u32 [#allocation9], 4
      %s70 = int_to_ptr.vmem [resolvable:$true] %s69
      %75 = dma.hbm_to_vmem [thread:$0]  %s68, 256, %s70, [#allocation10], 64, 64, 4
    $region21: #{tpu_custom_call.1} parent=1 // pred_fallthru
      _
    // Predicated region
    $region22: #{tpu_custom_call.1} parent=1 // pred_check
      _
    $region23: #{tpu_custom_call.1} parent=1 // pred_check_branch
      %77 = sbr.rel (0) target = $region25
    $region24: #{tpu_custom_call.1} parent=1 // pred_region
      _
    $region25: #{tpu_custom_call.1} parent=1 // pred_fallthru
      _
    // Predicated region
    $region26: #{tpu_custom_call.1} parent=1 // pred_check
      _
    $region27: #{tpu_custom_call.1} parent=1 // pred_check_branch
      %79 = sbr.rel (0) target = $region29
    $region28: #{tpu_custom_call.1} parent=1 // pred_region
      %81 = vsyncadd [#allocation10], 0
      %s82 = sshll.u32 %s6, 4
      %s83 = int_to_ptr.hbm [resolvable:$true] %s82
      %s84 = sshll.u32 [#allocation11], 4
      %s85 = int_to_ptr.vmem [resolvable:$true] %s84
      %90 = dma.hbm_to_vmem [thread:$0]  %s83, 256, %s85, [#allocation10], 64, 64, 4
    $region29: #{tpu_custom_call.1} parent=1 // pred_fallthru
      _
    // Predicated region
    $region30: #{tpu_custom_call.1} parent=1 // pred_check
      _
    $region31: #{tpu_custom_call.1} parent=1 // pred_check_branch
      %92 = sbr.rel (0) target = $region33
    $region32: #{tpu_custom_call.1} parent=1 // pred_region
      _
    $region33: #{tpu_custom_call.1} parent=1 // pred_fallthru
      _
    // Predicated region
    $region34: #{tpu_custom_call.1} parent=1 // pred_check
      _
    $region35: #{tpu_custom_call.1} parent=1 // pred_check_branch
      %94 = sbr.rel (0) target = $region37
    $region36: #{tpu_custom_call.1} parent=1 // pred_region
      %96 = vsyncadd [#allocation13], 0
      %s97 = sshll.u32 %s8, 4
      %s98 = int_to_ptr.hbm [resolvable:$true] %s97
      %s99 = sshll.u32 [#allocation12], 4
      %s100 = int_to_ptr.vmem [resolvable:$true] %s99
      %105 = dma.hbm_to_vmem [thread:$0]  %s98, 256, %s100, [#allocation13], 64, 64, 4
    $region37: #{tpu_custom_call.1} parent=1 // pred_fallthru
      _
    // Predicated region
    $region38: #{tpu_custom_call.1} parent=1 // pred_check
      _
    $region39: #{tpu_custom_call.1} parent=1 // pred_check_branch
      %107 = sbr.rel (0) target = $region41
    $region40: #{tpu_custom_call.1} parent=1 // pred_region
      _
    $region41: #{tpu_custom_call.1} parent=1 // pred_fallthru
      _
    // Predicated region
    $region42: #{tpu_custom_call.1} parent=1 // pred_check
      _
    $region43: #{tpu_custom_call.1} parent=1 // pred_check_branch
      %109 = sbr.rel (0) target = $region45
    $region44: #{tpu_custom_call.1} parent=1 // pred_region
      %111 = vsyncadd [#allocation13], 0
      %s112 = sshll.u32 %s10, 4
      %s113 = int_to_ptr.hbm [resolvable:$true] %s112
      %s114 = sshll.u32 [#allocation14], 4
      %s115 = int_to_ptr.vmem [resolvable:$true] %s114
      %120 = dma.hbm_to_vmem [thread:$0]  %s113, 256, %s115, [#allocation13], 64, 64, 4
    $region45: #{tpu_custom_call.1} parent=1 // pred_fallthru
      _
    // Predicated region
    $region46: #{tpu_custom_call.1} parent=1 // pred_check
      _
    $region47: #{tpu_custom_call.1} parent=1 // pred_check_branch
      %122 = sbr.rel (0) target = $region49
    $region48: #{tpu_custom_call.1} parent=1 // pred_region
      _
    $region49: #{tpu_custom_call.1} parent=1 // pred_fallthru
      _
    // Predicated region
    $region50: #{tpu_custom_call.1} parent=1 // pred_check
      _
    $region51: #{tpu_custom_call.1} parent=1 // pred_check_branch
      %124 = sbr.rel (0) target = $region53
    $region52: #{tpu_custom_call.1} parent=1 // pred_region
      %126 = dma.done [#allocation4], 128
    $region53: #{tpu_custom_call.1} parent=1 // pred_fallthru
      _
    // Predicated region
    $region54: #{tpu_custom_call.1} parent=1 // pred_check
      _
    $region55: #{tpu_custom_call.1} parent=1 // pred_check_branch
      %128 = sbr.rel (0) target = $region57
    $region56: #{tpu_custom_call.1} parent=1 // pred_region
      %130 = dma.done [#allocation7], 128
    $region57: #{tpu_custom_call.1} parent=1 // pred_fallthru
      _
    // Predicated region
    $region58: #{tpu_custom_call.1} parent=1 // pred_check
      _
    $region59: #{tpu_custom_call.1} parent=1 // pred_check_branch
      %132 = sbr.rel (0) target = $region61
    $region60: #{tpu_custom_call.1} parent=1 // pred_region
      %134 = dma.done [#allocation7], 128
    $region61: #{tpu_custom_call.1} parent=1 // pred_fallthru
      _
    // Predicated region
    $region62: #{tpu_custom_call.1} parent=1 // pred_check
      _
    $region63: #{tpu_custom_call.1} parent=1 // pred_check_branch
      %136 = sbr.rel (0) target = $region65
    $region64: #{tpu_custom_call.1} parent=1 // pred_region
      %138 = dma.done [#allocation10], 256
    $region65: #{tpu_custom_call.1} parent=1 // pred_fallthru
      _
    // Predicated region
    $region66: #{tpu_custom_call.1} parent=1 // pred_check
      _
    $region67: #{tpu_custom_call.1} parent=1 // pred_check_branch
      %140 = sbr.rel (0) target = $region69
    $region68: #{tpu_custom_call.1} parent=1 // pred_region
      %142 = dma.done [#allocation10], 256
    $region69: #{tpu_custom_call.1} parent=1 // pred_fallthru
      _
    // Predicated region
    $region70: #{tpu_custom_call.1} parent=1 // pred_check
      _
    $region71: #{tpu_custom_call.1} parent=1 // pred_check_branch
      %144 = sbr.rel (0) target = $region73
    $region72: #{tpu_custom_call.1} parent=1 // pred_region
      %146 = dma.done [#allocation13], 256
    $region73: #{tpu_custom_call.1} parent=1 // pred_fallthru
      _
    // Predicated region
    $region74: #{tpu_custom_call.1} parent=1 // pred_check
      _
    $region75: #{tpu_custom_call.1} parent=1 // pred_check_branch
      %148 = sbr.rel (0) target = $region77
    $region76: #{tpu_custom_call.1} parent=1 // pred_region
      %150 = dma.done [#allocation13], 256
    $region77: #{tpu_custom_call.1} parent=1 // pred_fallthru
      _
    %v152 = vld [vmem:[#allocation3] sm:$0xf]
    %v153 = vld [vmem:[#allocation3 + $0x4] sm:$0xf]
    %v154 = vld [vmem:[#allocation6] sm:$0xf]
    %v155 = vld [vmem:[#allocation6 + $0x4] sm:$0xf]
    %v156 = vld [vmem:[#allocation8] sm:$0xf]
    %v157 = vld [vmem:[#allocation8 + $0x4] sm:$0xf]
    %v158 = vld [vmem:[#allocation9] sm:$0xf]
    %v159 = vld [vmem:[#allocation9 + $0x4] sm:$0xf]
    %v160 = vld [vmem:[#allocation9 + $0x8] sm:$0xf]
    %v161 = vld [vmem:[#allocation9 + $0xc] sm:$0xf]
    %v162 = vld [vmem:[%s5] sm:$0x1]
    %v164 = vperm.slane %v162, 0
    %v168 = vunpack.c.l.b16 %v152
    %v169 = vunpack.c.l.b16 %v153
    %v170 = vpack.c.b16 %v169, %v168
    %v175 = vunpack.c.l.b16 %v158
    %v176 = vunpack.c.l.b16 %v159
    %v177 = vunpack.c.l.b16 %v160
    %v178 = vunpack.c.l.b16 %v161
    %v179 = vpack.c.b16 %v176, %v175
    %v180 = vpack.c.b16 %v178, %v177
    %vm183 = vcmask 261120
    %v185 = vsel %vm183, %v170, 0
    %187 = vmatpush.bf16.msra.mxu0 0
    %188 = vmatpush.bf16.msra.mxu0 0
    %189 = vmatpush.bf16.msra.mxu0 0
    %190 = vmatpush.bf16.msra.mxu0 0
    %191 = vmatpush.bf16.msra.mxu0 0
    %192 = vmatpush.bf16.msra.mxu0 0
    %193 = vmatpush.bf16.msra.mxu0 %v180
    %194 = vmatpush.bf16.msra.mxu0 %v179
    %195 = vmatmul.bf16.gmra.mxu0 %v185
    %v196 = vpop.f32.mrf.mxu0
    %v197 = vadd.f32 %v164, %v196
    %v198 = vpop.f32.mrf.mxu0
    %v199 = vadd.f32 %v164, %v198
    %200 = vdwg.mxu0
    %v201 = vmul.f32 %v197, 0.25
    %v202 = vmul.f32 %v199, 0.25
    %v203 = vpack.c.bf16 %v201, %v201
    %v204 = vpack.c.bf16 %v202, %v202
    %v205 = vld [vmem:[#allocation11] sm:$0xf]
    %v206 = vld [vmem:[#allocation11 + $0x4] sm:$0xf]
    %v207 = vld [vmem:[#allocation11 + $0x8] sm:$0xf]
    %v208 = vld [vmem:[#allocation11 + $0xc] sm:$0xf]
    %v209 = vld [vmem:[%s7] sm:$0x1]
    %v211 = vperm.slane %v209, 0
    %v215 = vunpack.c.l.b16 %v154
    %v216 = vunpack.c.l.b16 %v155
    %v217 = vpack.c.b16 %v216, %v215
    %v222 = vunpack.c.l.b16 %v205
    %v223 = vunpack.c.l.b16 %v206
    %v224 = vunpack.c.l.b16 %v207
    %v225 = vunpack.c.l.b16 %v208
    %v226 = vpack.c.b16 %v223, %v222
    %v227 = vpack.c.b16 %v225, %v224
    %v231 = vsel %vm183, %v217, 0
    %233 = vmatpush.bf16.msra.mxu0 0
    %234 = vmatpush.bf16.msra.mxu0 0
    %235 = vmatpush.bf16.msra.mxu0 0
    %236 = vmatpush.bf16.msra.mxu0 0
    %237 = vmatpush.bf16.msra.mxu0 0
    %238 = vmatpush.bf16.msra.mxu0 0
    %239 = vmatpush.bf16.msra.mxu0 %v227
    %240 = vmatpush.bf16.msra.mxu0 %v226
    %241 = vmatmul.bf16.gmra.mxu0 %v231
    %v242 = vpop.f32.mrf.mxu0
    %v243 = vadd.f32 %v211, %v242
    %v244 = vpop.f32.mrf.mxu0
    %v245 = vadd.f32 %v211, %v244
    %246 = vdwg.mxu0
    %v247 = vpack.c.bf16 %v243, %v243
    %v248 = vpack.c.bf16 %v245, %v245
    %v249 = vld [vmem:[#allocation12] sm:$0xf]
    %v250 = vld [vmem:[#allocation12 + $0x4] sm:$0xf]
    %v251 = vld [vmem:[#allocation12 + $0x8] sm:$0xf]
    %v252 = vld [vmem:[#allocation12 + $0xc] sm:$0xf]
    %v253 = vld [vmem:[%s9] sm:$0x1]
    %v255 = vperm.slane %v253, 0
    %v259 = vunpack.c.l.b16 %v156
    %v260 = vunpack.c.l.b16 %v157
    %v261 = vpack.c.b16 %v260, %v259
    %v266 = vunpack.c.l.b16 %v249
    %v267 = vunpack.c.l.b16 %v250
    %v268 = vunpack.c.l.b16 %v251
    %v269 = vunpack.c.l.b16 %v252
    %v270 = vpack.c.b16 %v267, %v266
    %v271 = vpack.c.b16 %v269, %v268
    %v275 = vsel %vm183, %v261, 0
    %277 = vmatpush.bf16.msra.mxu0 0
    %278 = vmatpush.bf16.msra.mxu0 0
    %279 = vmatpush.bf16.msra.mxu0 0
    %280 = vmatpush.bf16.msra.mxu0 0
    %281 = vmatpush.bf16.msra.mxu0 0
    %282 = vmatpush.bf16.msra.mxu0 0
    %283 = vmatpush.bf16.msra.mxu0 %v271
    %284 = vmatpush.bf16.msra.mxu0 %v270
    %285 = vmatmul.bf16.gmra.mxu0 %v275
    %v286 = vpop.f32.mrf.mxu0
    %v287 = vadd.f32 %v255, %v286
    %v288 = vpop.f32.mrf.mxu0
    %v289 = vadd.f32 %v255, %v288
    %290 = vdwg.mxu0
    %v291 = vpack.c.bf16 %v287, %v287
    %v292 = vpack.c.bf16 %v289, %v289
    %v293 = vld [vmem:[%s3] sm:$0x1]
    %v294 = vld [vmem:[%s3 + $0x1] sm:$0x1]
    %v297 = vperm.slane %v293, 0
    %v298 = vperm.slane %v294, 0
    %vm301 = vcmask 130048
    %v303 = vsel %vm301, %v203, 0
    %v306 = vsel %vm301, %v247, 0
    %308 = vmatpush.bf16.xpose.msra.mxu0 0
    %309 = vmatpush.bf16.xpose.msra.mxu0 0
    %310 = vmatpush.bf16.xpose.msra.mxu0 0
    %311 = vmatpush.bf16.xpose.msra.mxu0 0
    %312 = vmatpush.bf16.xpose.msra.mxu0 0
    %313 = vmatpush.bf16.xpose.msra.mxu0 0
    %314 = vmatpush.bf16.xpose.msra.mxu0 0
    %315 = vmatpush.bf16.xpose.msra.mxu0 %v306
    %316 = vmatmul.bf16.gmra.mxu0 %v303
    %v317 = vpop.f32.mrf.mxu0
    %v318 = vadd.f32 %v297, %v317
    %v319 = vpop.f32.mrf.mxu0
    %320 = vdwg.mxu0
    %v322 = vsel %vm301, %v204, 0
    %v325 = vsel %vm301, %v248, 0
    %327 = vmatpush.bf16.xpose.msra.mxu0 0
    %328 = vmatpush.bf16.xpose.msra.mxu0 0
    %329 = vmatpush.bf16.xpose.msra.mxu0 0
    %330 = vmatpush.bf16.xpose.msra.mxu0 0
    %331 = vmatpush.bf16.xpose.msra.mxu0 0
    %332 = vmatpush.bf16.xpose.msra.mxu0 0
    %333 = vmatpush.bf16.xpose.msra.mxu0 0
    %334 = vmatpush.bf16.xpose.msra.mxu0 %v325
    %335 = vmatmul.bf16.gmra.mxu0 %v322
    %v336 = vpop.f32.mrf.mxu0
    %v337 = vadd.f32 %v298, %v336
    %v338 = vpop.f32.mrf.mxu0
    %339 = vdwg.mxu0
    %vm340 = vcmask 64512
    %v341 = vsel %vm340, %v318, -inf
    %342 = vmax.xlane.f32.xlu0 %v341
    %v343 = vpop.xlane.xlu0 %342
    %v344 = vsel %vm340, %v337, -inf
    %345 = vmax.xlane.f32.xlu0 %v344
    %v346 = vpop.xlane.xlu0 %345
    %v347 = vsub.f32 %v318, %v343
    %v348 = vsub.f32 %v337, %v346
    %v349 = vmul.f32 %v347, 1.442695
    %v350 = vpow.pop %v349
    %v351 = vmul.f32 %v348, 1.442695
    %v352 = vpow.pop %v351
    %v353 = vsel %vm340, %v350, 0.0
    %354 = vadd.xlane.f32.xlu0 %v353
    %v355 = vpop.xlane.xlu0 %354
    %v356 = vsel %vm340, %v352, 0.0
    %357 = vadd.xlane.f32.xlu0 %v356
    %v358 = vpop.xlane.xlu0 %357
    %v359 = vrcp.pop %v355
    %v360 = vrcp.pop %v358
    %v361 = vmul.f32 %v350, %v359
    %v362 = vmul.f32 %v352, %v360
    %v363 = vpack.c.bf16 %v361, %v361
    %v364 = vpack.c.bf16 %v362, %v362
    %v366 = vsel %vm340, %v363, 0
    %vm368 = vcmask 1043456
    %v370 = vsel %vm368, %v291, 0
    %372 = vmatpush.bf16.msra.mxu0 0
    %373 = vmatpush.bf16.msra.mxu0 0
    %374 = vmatpush.bf16.msra.mxu0 0
    %375 = vmatpush.bf16.msra.mxu0 0
    %376 = vmatpush.bf16.msra.mxu0 0
    %377 = vmatpush.bf16.msra.mxu0 0
    %378 = vmatpush.bf16.msra.mxu0 0
    %379 = vmatpush.bf16.msra.mxu0 %v370
    %380 = vmatmul.bf16.gmra.mxu0 %v366
    %v381 = vpop.f32.mrf.mxu0
    %v382 = vadd.f32 0.0, %v381
    %v383 = vpop.f32.mrf.mxu0
    %384 = vdwg.mxu0
    %v386 = vsel %vm340, %v364, 0
    %v389 = vsel %vm368, %v292, 0
    %391 = vmatpush.bf16.msra.mxu0 0
    %392 = vmatpush.bf16.msra.mxu0 0
    %393 = vmatpush.bf16.msra.mxu0 0
    %394 = vmatpush.bf16.msra.mxu0 0
    %395 = vmatpush.bf16.msra.mxu0 0
    %396 = vmatpush.bf16.msra.mxu0 0
    %397 = vmatpush.bf16.msra.mxu0 0
    %398 = vmatpush.bf16.msra.mxu0 %v389
    %399 = vmatmul.bf16.gmra.mxu0 %v386
    %v400 = vpop.f32.mrf.mxu0
    %v401 = vadd.f32 0.0, %v400
    %v402 = vpop.f32.mrf.mxu0
    %403 = vdwg.mxu0
    %404 = vst.msk [vmem:[#allocation2] sm:$0xff] %vm301, %v382
    %405 = vst.msk [vmem:[#allocation2 + $0x8] sm:$0xff] %vm301, %v401
    %v407 = vunpack.c.l.b16 %v203
    %v408 = vpack.c.b16 %v407, %v407
    %409 = vrot.lane.b32.xlu0 %v408, 112
    %v410 = vpop.permute.xlu0 %409
    %v412 = vunpack.c.l.b16 %v247
    %v413 = vpack.c.b16 %v412, %v412
    %414 = vrot.lane.b32.xlu0 %v413, 112
    %v415 = vpop.permute.xlu0 %414
    %v417 = vsel %vm301, %v410, 0
    %v420 = vsel %vm301, %v415, 0
    %422 = vmatpush.bf16.xpose.msra.mxu0 0
    %423 = vmatpush.bf16.xpose.msra.mxu0 0
    %424 = vmatpush.bf16.xpose.msra.mxu0 0
    %425 = vmatpush.bf16.xpose.msra.mxu0 0
    %426 = vmatpush.bf16.xpose.msra.mxu0 0
    %427 = vmatpush.bf16.xpose.msra.mxu0 0
    %428 = vmatpush.bf16.xpose.msra.mxu0 0
    %429 = vmatpush.bf16.xpose.msra.mxu0 %v420
    %430 = vmatmul.bf16.gmra.mxu0 %v417
    %v431 = vpop.f32.mrf.mxu0
    %v432 = vadd.f32 %v297, %v431
    %v433 = vpop.f32.mrf.mxu0
    %434 = vdwg.mxu0
    %v436 = vunpack.c.l.b16 %v204
    %v437 = vpack.c.b16 %v436, %v436
    %438 = vrot.lane.b32.xlu0 %v437, 112
    %v439 = vpop.permute.xlu0 %438
    %v441 = vunpack.c.l.b16 %v248
    %v442 = vpack.c.b16 %v441, %v441
    %443 = vrot.lane.b32.xlu0 %v442, 112
    %v444 = vpop.permute.xlu0 %443
    %v446 = vsel %vm301, %v439, 0
    %v449 = vsel %vm301, %v444, 0
    %451 = vmatpush.bf16.xpose.msra.mxu0 0
    %452 = vmatpush.bf16.xpose.msra.mxu0 0
    %453 = vmatpush.bf16.xpose.msra.mxu0 0
    %454 = vmatpush.bf16.xpose.msra.mxu0 0
    %455 = vmatpush.bf16.xpose.msra.mxu0 0
    %456 = vmatpush.bf16.xpose.msra.mxu0 0
    %457 = vmatpush.bf16.xpose.msra.mxu0 0
    %458 = vmatpush.bf16.xpose.msra.mxu0 %v449
    %459 = vmatmul.bf16.gmra.mxu0 %v446
    %v460 = vpop.f32.mrf.mxu0
    %v461 = vadd.f32 %v298, %v460
    %v462 = vpop.f32.mrf.mxu0
    %463 = vdwg.mxu0
    %v464 = vsel %vm340, %v432, -inf
    %465 = vmax.xlane.f32.xlu0 %v464
    %v466 = vpop.xlane.xlu0 %465
    %v467 = vsel %vm340, %v461, -inf
    %468 = vmax.xlane.f32.xlu0 %v467
    %v469 = vpop.xlane.xlu0 %468
    %v470 = vsub.f32 %v432, %v466
    %v471 = vsub.f32 %v461, %v469
    %v472 = vmul.f32 %v470, 1.442695
    %v473 = vpow.pop %v472
    %v474 = vmul.f32 %v471, 1.442695
    %v475 = vpow.pop %v474
    %v476 = vsel %vm340, %v473, 0.0
    %477 = vadd.xlane.f32.xlu0 %v476
    %v478 = vpop.xlane.xlu0 %477
    %v479 = vsel %vm340, %v475, 0.0
    %480 = vadd.xlane.f32.xlu0 %v479
    %v481 = vpop.xlane.xlu0 %480
    %v482 = vrcp.pop %v478
    %v483 = vrcp.pop %v481
    %v484 = vmul.f32 %v473, %v482
    %v485 = vmul.f32 %v475, %v483
    %v486 = vpack.c.bf16 %v484, %v484
    %v487 = vpack.c.bf16 %v485, %v485
    %v489 = vunpack.c.l.b16 %v291
    %v490 = vpack.c.b16 %v489, %v489
    %491 = vrot.lane.b32.xlu0 %v490, 112
    %v492 = vpop.permute.xlu0 %491
    %v494 = vsel %vm340, %v486, 0
    %v497 = vsel %vm368, %v492, 0
    %499 = vmatpush.bf16.msra.mxu0 0
    %500 = vmatpush.bf16.msra.mxu0 0
    %501 = vmatpush.bf16.msra.mxu0 0
    %502 = vmatpush.bf16.msra.mxu0 0
    %503 = vmatpush.bf16.msra.mxu0 0
    %504 = vmatpush.bf16.msra.mxu0 0
    %505 = vmatpush.bf16.msra.mxu0 0
    %506 = vmatpush.bf16.msra.mxu0 %v497
    %507 = vmatmul.bf16.gmra.mxu0 %v494
    %v508 = vpop.f32.mrf.mxu0
    %v509 = vadd.f32 0.0, %v508
    %v510 = vpop.f32.mrf.mxu0
    %511 = vdwg.mxu0
    %v513 = vunpack.c.l.b16 %v292
    %v514 = vpack.c.b16 %v513, %v513
    %515 = vrot.lane.b32.xlu0 %v514, 112
    %v516 = vpop.permute.xlu0 %515
    %v518 = vsel %vm340, %v487, 0
    %v521 = vsel %vm368, %v516, 0
    %523 = vmatpush.bf16.msra.mxu0 0
    %524 = vmatpush.bf16.msra.mxu0 0
    %525 = vmatpush.bf16.msra.mxu0 0
    %526 = vmatpush.bf16.msra.mxu0 0
    %527 = vmatpush.bf16.msra.mxu0 0
    %528 = vmatpush.bf16.msra.mxu0 0
    %529 = vmatpush.bf16.msra.mxu0 0
    %530 = vmatpush.bf16.msra.mxu0 %v521
    %531 = vmatmul.bf16.gmra.mxu0 %v518
    %v532 = vpop.f32.mrf.mxu0
    %v533 = vadd.f32 0.0, %v532
    %v534 = vpop.f32.mrf.mxu0
    %535 = vdwg.mxu0
    %538 = vrot.lane.b32.xlu0 %v509, 16
    %v539 = vpop.permute.xlu0 %538
    %540 = vrot.lane.b32.xlu0 %v533, 16
    %v541 = vpop.permute.xlu0 %540
    %vm544 = vcmask 261248
    %545 = vst.msk [vmem:[#allocation2] sm:$0xff] %vm544, %v539
    %546 = vst.msk [vmem:[#allocation2 + $0x8] sm:$0xff] %vm544, %v541
    %v547 = vld [vmem:[#allocation2] sm:$0xff]
    %v548 = vld [vmem:[#allocation2 + $0x8] sm:$0xff]
    %v549 = vpack.c.bf16 %v547, %v547
    %v550 = vpack.c.bf16 %v548, %v548
    %v551 = vld [vmem:[#allocation14] sm:$0xf]
    %v552 = vld [vmem:[#allocation14 + $0x4] sm:$0xf]
    %v553 = vld [vmem:[#allocation14 + $0x8] sm:$0xf]
    %v554 = vld [vmem:[#allocation14 + $0xc] sm:$0xf]
    %v555 = vld [vmem:[%s11] sm:$0x1]
    %v557 = vperm.slane %v555, 0
    %v561 = vunpack.c.l.b16 %v549
    %v562 = vunpack.c.l.b16 %v550
    %v563 = vpack.c.b16 %v562, %v561
    %v568 = vunpack.c.l.b16 %v551
    %v569 = vunpack.c.l.b16 %v552
    %v570 = vunpack.c.l.b16 %v553
    %v571 = vunpack.c.l.b16 %v554
    %v572 = vpack.c.b16 %v569, %v568
    %v573 = vpack.c.b16 %v571, %v570
    %v577 = vsel %vm183, %v563, 0
    %579 = vmatpush.bf16.msra.mxu0 0
    %580 = vmatpush.bf16.msra.mxu0 0
    %581 = vmatpush.bf16.msra.mxu0 0
    %582 = vmatpush.bf16.msra.mxu0 0
    %583 = vmatpush.bf16.msra.mxu0 0
    %584 = vmatpush.bf16.msra.mxu0 0
    %585 = vmatpush.bf16.msra.mxu0 %v573
    %586 = vmatpush.bf16.msra.mxu0 %v572
    %587 = vmatmul.bf16.gmra.mxu0 %v577
    %v588 = vpop.f32.mrf.mxu0
    %v589 = vadd.f32 %v557, %v588
    %v590 = vpop.f32.mrf.mxu0
    %v591 = vadd.f32 %v557, %v590
    %592 = vdwg.mxu0
    %593 = vst [vmem:[#allocation15] sm:$0xff] %v589
    %594 = vst [vmem:[#allocation15 + $0x8] sm:$0xff] %v591
    // Predicated region
    $region78: #{tpu_custom_call.1} parent=1 // pred_check
      _
    $region79: #{tpu_custom_call.1} parent=1 // pred_check_branch
      %596 = sbr.rel (0) target = $region81
    $region80: #{tpu_custom_call.1} parent=1 // pred_region
      %598 = vsyncadd [#allocation5], 0
      %s599 = sshll.u32 [#allocation15], 4
      %s600 = int_to_ptr.vmem [resolvable:$true] %s599
      %s601 = sshll.u32 %s12, 4
      %s602 = int_to_ptr.hbm [resolvable:$true] %s601
      %607 = dma.vmem_to_hbm [thread:$0]  %s600, 256, %s602, [#allocation5], 128, 128, 8
    $region81: #{tpu_custom_call.1} parent=1 // pred_fallthru
      _
    // Predicated region
    $region82: #{tpu_custom_call.1} parent=1 // pred_check
      _
    $region83: #{tpu_custom_call.1} parent=1 // pred_check_branch
      %609 = sbr.rel (0) target = $region85
    $region84: #{tpu_custom_call.1} parent=1 // pred_region
      %611 = dma.done [#allocation5], 256
    $region85: #{tpu_custom_call.1} parent=1 // pred_fallthru
      _
    %612 = vsyncpa [#allocation4], 1
    %613 = vsyncpa [#allocation7], 1
    %614 = vsyncpa [#allocation10], 1
    %615 = vsyncpa [#allocation13], 1
    %616 = vsyncpa [#allocation5], 1

</llo_original>
